<compile_context>
chip_gen: v6e
topology: v6e:2x2x1
jax: 0.10.0
libtpu: 0.0.40
codegen_flags: <defaults>
</compile_context>

<pallas_src>
import functools

import jax
import jax.numpy as jnp
from jax import lax
from jax.experimental import pallas as pl
from jax.experimental.pallas import tpu as pltpu


_LANE = 128
_CONTRACT_LAST = (((1,), (1,)), ((), ()))   # contract dim 1 of both operands


# ------------------------- VMEM / tile planning -------------------------

def _vmem_capacity_bytes() -> int:
    """Physical VMEM per core; conservative 64 MiB (v7x-sized) fallback."""
    try:
        info = pltpu.get_tpu_info()
        for attr in ("vmem_capacity_bytes", "vmem_bytes"):
            cap = int(getattr(info, attr, 0) or 0)
            if cap > 0:
                return cap
    except Exception:
        pass
    return 64 * 1024 * 1024


def _round_down_lane(x: int) -> int:
    return max(_LANE, (x // _LANE) * _LANE)


def _round_up_lane(x: int) -> int:
    return ((x + _LANE - 1) // _LANE) * _LANE


def _choose_tm(M: int) -> int:
    """Row-block size.  >1 block only when M is big enough to shard across
    TensorCores (v7x) / tile the resident (M, M) slabs; tm always divides M
    so no row masking is ever needed."""
    if M >= 512 and M % 256 == 0:
        return 256
    if M >= 256 and M % 128 == 0:
        return 128
    return M


def _choose_tk(K: int, bytes_per_col: int, budget_bytes: int,
               target_steps: int = 4) -> int:
    """Largest lane-aligned K tile that fits the VMEM budget, aiming for a
    handful of pipeline steps (per-grid-step overhead is ~0.35 us)."""
    if K <= 2048:
        return K                                    # single full-width tile
    tk_cap = _round_down_lane(budget_bytes // max(bytes_per_col, 1))
    tk_target = _round_up_lane((K + target_steps - 1) // target_steps)
    tk = min(tk_cap, max(tk_target, 2048))
    return K if tk >= K else tk


def _plan_tiles(M, K, elt, *, n_resident_slabs, tk, tm):
    """Pick (tm, tk) under the per-core VMEM budget; fail loudly if impossible."""
    cap = _vmem_capacity_bytes()
    budget = int(cap * 0.70)

    if tm is None or tm > M or (M % max(tm, 1)) != 0:
        tm = _choose_tm(M)
    row_tiled = tm < M
    rows = tm if row_tiled else M

    # Resident f32 slabs (accumulator / double-buffered output / target).
    fixed = n_resident_slabs * rows * M * 4
    # Double-buffered DMA bytes per K column (LHS row block + full-width RHS).
    per_col = (2 * (tm + M) if row_tiled else 2 * M) * elt

    if fixed + per_col * _LANE > budget:
        raise ValueError(
            f"StyleLoss Pallas kernel: resident blocks need "
            f"{fixed + per_col * _LANE} B of VMEM but only {budget} B are "
            f"budgeted on this TPU (M={M}); reduce batch*channels.")

    if tk is None:
        tk = _choose_tk(K, per_col, budget - fixed)
    tk = max(1, min(tk, K))
    n_k = pl.cdiv(K, tk)
    rem = K % tk if tk < K else 0

    est = fixed + per_col * tk + (4 << 20)
    vmem_limit = min(int(cap * 0.9), max(est, 32 << 20))
    return tm, row_tiled, tk, n_k, rem, vmem_limit


def _flatten(x):
    a, b, c, d = x.shape
    M, K = a * b, c * d
    return x.reshape(M, K), M, K, 1.0 / float(a * b * c * d)


# ------------------------------- kernels ----------------------------------
# Tail masking runs only on the final K step (pl.when split); the in-kernel
# compute_dtype cast keeps DMA at the input dtype while cutting MXU passes.

def _gram_kernel_1d(feat_ref, g_ref, *, inv_norm, rem, compute_dtype):
    k, n_k = pl.program_id(0), pl.num_programs(0)

    @pl.when(k == 0)
    def _():
        g_ref[...] = jnp.zeros_like(g_ref)

    def accum(mask_tail):
        f = feat_ref[...]
        if mask_tail:
            col = lax.broadcasted_iota(jnp.int32, f.shape, 1)
            f = jnp.where(col < rem, f, jnp.zeros_like(f))
        if compute_dtype is not None:
            f = f.astype(compute_dtype)
        g_ref[...] += lax.dot_general(f, f, _CONTRACT_LAST,
                                      preferred_element_type=jnp.float32)

    if rem:
        @pl.when(k < n_k - 1)
        def _():
            accum(False)

        @pl.when(k == n_k - 1)
        def _():
            accum(True)
    else:
        accum(False)

    @pl.when(k == n_k - 1)
    def _():
        g_ref[...] = g_ref[...] * inv_norm


def _loss_kernel_1d(feat_ref, target_ref, loss_ref, acc_ref, *,
                    inv_norm, inv_count, rem, compute_dtype):
    k, n_k = pl.program_id(0), pl.num_programs(0)

    @pl.when(k == 0)
    def _():
        acc_ref[...] = jnp.zeros_like(acc_ref)

    def accum(mask_tail):
        f = feat_ref[...]
        if mask_tail:
            col = lax.broadcasted_iota(jnp.int32, f.shape, 1)
            f = jnp.where(col < rem, f, jnp.zeros_like(f))
        if compute_dtype is not None:
            f = f.astype(compute_dtype)
        acc_ref[...] += lax.dot_general(f, f, _CONTRACT_LAST,
                                        preferred_element_type=jnp.float32)

    if rem:
        @pl.when(k < n_k - 1)
        def _():
            accum(False)

        @pl.when(k == n_k - 1)
        def _():
            accum(True)
    else:
        accum(False)

    @pl.when(k == n_k - 1)
    def _():
        diff = acc_ref[...] * inv_norm - target_ref[...].astype(jnp.float32)
        loss_ref[...] = (jnp.sum(diff * diff, keepdims=True) * inv_count
                         ).astype(loss_ref.dtype)


def _gram_kernel_2d(lhs_ref, rhs_ref, g_ref, *, inv_norm, rem, compute_dtype):
    k, n_k = pl.program_id(1), pl.num_programs(1)

    @pl.when(k == 0)
    def _():
        g_ref[...] = jnp.zeros_like(g_ref)

    def accum(mask_tail):
        l = lhs_ref[...]
        r = rhs_ref[...]
        if mask_tail:
            cl = lax.broadcasted_iota(jnp.int32, l.shape, 1)
            l = jnp.where(cl < rem, l, jnp.zeros_like(l))
            cr = lax.broadcasted_iota(jnp.int32, r.shape, 1)
            r = jnp.where(cr < rem, r, jnp.zeros_like(r))
        if compute_dtype is not None:
            l = l.astype(compute_dtype)
            r = r.astype(compute_dtype)
        g_ref[...] += lax.dot_general(l, r, _CONTRACT_LAST,
                                      preferred_element_type=jnp.float32)

    if rem:
        @pl.when(k < n_k - 1)
        def _():
            accum(False)

        @pl.when(k == n_k - 1)
        def _():
            accum(True)
    else:
        accum(False)

    @pl.when(k == n_k - 1)
    def _():
        g_ref[...] = g_ref[...] * inv_norm


def _loss_kernel_2d(lhs_ref, rhs_ref, target_ref, part_ref, acc_ref, *,
                    inv_norm, rem, compute_dtype):
    k, n_k = pl.program_id(1), pl.num_programs(1)

    @pl.when(k == 0)
    def _():
        acc_ref[...] = jnp.zeros_like(acc_ref)

    def accum(mask_tail):
        l = lhs_ref[...]
        r = rhs_ref[...]
        if mask_tail:
            cl = lax.broadcasted_iota(jnp.int32, l.shape, 1)
            l = jnp.where(cl < rem, l, jnp.zeros_like(l))
            cr = lax.broadcasted_iota(jnp.int32, r.shape, 1)
            r = jnp.where(cr < rem, r, jnp.zeros_like(r))
        if compute_dtype is not None:
            l = l.astype(compute_dtype)
            r = r.astype(compute_dtype)
        acc_ref[...] += lax.dot_general(l, r, _CONTRACT_LAST,
                                        preferred_element_type=jnp.float32)

    if rem:
        @pl.when(k < n_k - 1)
        def _():
            accum(False)

        @pl.when(k == n_k - 1)
        def _():
            accum(True)
    else:
        accum(False)

    @pl.when(k == n_k - 1)
    def _():
        diff = acc_ref[...] * inv_norm - target_ref[...].astype(jnp.float32)
        sse = jnp.sum(diff * diff)                    # raw SSE for this row slab
        part_ref[...] = jnp.broadcast_to(sse, part_ref.shape)


# ------------------------------- wrappers ----------------------------------

def gram_matrix(x, *, tk=None, tm=None, compute_dtype=None):
    """Pallas Gram matrix: F = x.view(N*C, H*W); G = F @ F.T / (N*C*H*W) (f32)."""
    feats, M, K, inv_norm = _flatten(x)
    elt = jnp.dtype(feats.dtype).itemsize
    if compute_dtype is not None:
        compute_dtype = jnp.dtype(compute_dtype)
    tm, row_tiled, tk, n_k, rem, vmem_limit = _plan_tiles(
        M, K, elt, n_resident_slabs=2, tk=tk, tm=tm)

    if row_tiled:
        n_m = M // tm
        kernel = functools.partial(_gram_kernel_2d, inv_norm=inv_norm, rem=rem,
                                   compute_dtype=compute_dtype)
        grid_spec = pltpu.PrefetchScalarGridSpec(
            num_scalar_prefetch=0, grid=(n_m, n_k),
            in_specs=[pl.BlockSpec((tm, tk), lambda i, k: (i, k)),
                      pl.BlockSpec((M, tk), lambda i, k: (0, k))],
            out_specs=pl.BlockSpec((tm, M), lambda i, k: (i, 0)))
        semantics = ("parallel", "arbitrary")
        args = (feats, feats)
        bytes_acc = (1 + n_m) * M * K * elt + M * M * 4
    else:
        kernel = functools.partial(_gram_kernel_1d, inv_norm=inv_norm, rem=rem,
                                   compute_dtype=compute_dtype)
        grid_spec = pltpu.PrefetchScalarGridSpec(
            num_scalar_prefetch=0, grid=(n_k,),
            in_specs=[pl.BlockSpec((M, tk), lambda k: (0, k))],
            out_specs=pl.BlockSpec((M, M), lambda k: (0, 0)))
        semantics = ("arbitrary",)
        args = (feats,)
        bytes_acc = M * K * elt + M * M * 4

    return pl.pallas_call(
        kernel,
        out_shape=jax.ShapeDtypeStruct((M, M), jnp.float32),
        grid_spec=grid_spec,
        compiler_params=pltpu.CompilerParams(dimension_semantics=semantics,
                                             vmem_limit_bytes=vmem_limit),
        cost_estimate=pl.CostEstimate(flops=2 * M * M * K, transcendentals=0,
                                      bytes_accessed=int(bytes_acc)),
    )(*args)


def style_loss(x, target_gram, *, tk=None, tm=None, compute_dtype=None):
    """mse_loss(gram_matrix(x), target_gram), fused: the (M, M) Gram never
    leaves VMEM; only the scalar loss (or per-row-block partials) hits HBM."""
    feats, M, K, inv_norm = _flatten(x)
    elt = jnp.dtype(feats.dtype).itemsize
    if compute_dtype is not None:
        compute_dtype = jnp.dtype(compute_dtype)
    tm, row_tiled, tk, n_k, rem, vmem_limit = _plan_tiles(
        M, K, elt, n_resident_slabs=3, tk=tk, tm=tm)
    target32 = target_gram.astype(jnp.float32)
    inv_count = 1.0 / float(M * M)

    if row_tiled:
        n_m = M // tm
        kernel = functools.partial(_loss_kernel_2d, inv_norm=inv_norm, rem=rem,
                                   compute_dtype=compute_dtype)
        partials = pl.pallas_call(
            kernel,
            out_shape=jax.ShapeDtypeStruct((n_m, 1, _LANE), jnp.float32),
            grid_spec=pltpu.PrefetchScalarGridSpec(
                num_scalar_prefetch=0, grid=(n_m, n_k),
                in_specs=[pl.BlockSpec((tm, tk), lambda i, k: (i, k)),
                          pl.BlockSpec((M, tk), lambda i, k: (0, k)),
                          pl.BlockSpec((tm, M), lambda i, k: (i, 0))],
                out_specs=pl.BlockSpec((None, 1, _LANE), lambda i, k: (i, 0, 0)),
                scratch_shapes=[pltpu.VMEM((tm, M), jnp.float32)]),
            compiler_params=pltpu.CompilerParams(
                dimension_semantics=("parallel", "arbitrary"),
                vmem_limit_bytes=vmem_limit),
            cost_estimate=pl.CostEstimate(
                flops=2 * M * M * K, transcendentals=0,
                bytes_accessed=int((1 + n_m) * M * K * elt + 2 * M * M * 4)),
        )(feats, feats, target32)
        return jnp.sum(partials[:, 0, 0]) * jnp.float32(inv_count)

    # Single row block: one feature DMA stream, resident (M, M) accumulator.
    # Target stays resident for the K loop; negligible for M <= 512.
    kernel = functools.partial(_loss_kernel_1d, inv_norm=inv_norm,
                               inv_count=inv_count, rem=rem,
                               compute_dtype=compute_dtype)
    loss = pl.pallas_call(
        kernel,
        out_shape=jax.ShapeDtypeStruct((1, 1), jnp.float32),
        grid_spec=pltpu.PrefetchScalarGridSpec(
            num_scalar_prefetch=0, grid=(n_k,),
            in_specs=[pl.BlockSpec((M, tk), lambda k: (0, k)),
                      pl.BlockSpec((M, M), lambda k: (0, 0))],
            out_specs=pl.BlockSpec((1, 1), lambda k: (0, 0)),
            scratch_shapes=[pltpu.VMEM((M, M), jnp.float32)]),
        compiler_params=pltpu.CompilerParams(
            dimension_semantics=("arbitrary",),
            vmem_limit_bytes=vmem_limit),
        cost_estimate=pl.CostEstimate(
            flops=2 * M * M * K, transcendentals=0,
            bytes_accessed=int(M * K * elt + 2 * M * M * 4)),
    )(feats, target32)
    return loss[0, 0]


class StyleLoss:
    """JAX/Pallas port of the PyTorch StyleLoss module (forward pass).

    compute_dtype=bf16 is an opt-in speed/precision trade (in-kernel tile cast,
    f32 accumulation); default None matches the f32 PyTorch module.
    Note: mutating self.loss is an eager-mode side effect (as in PyTorch); it
    is not suitable for tracing the module itself under jax.jit.
    """

    def __init__(self, target_feature, *, compute_dtype=None):
        self.compute_dtype = compute_dtype
        # target Gram computed once; "detached" == a constant array here
        self.target = gram_matrix(target_feature, compute_dtype=compute_dtype)
        self.loss = jnp.float32(0.0)

    def __call__(self, x):
        self.loss = style_loss(x, self.target, compute_dtype=self.compute_dtype)
        return x   # pass-through, matching the PyTorch module


# ------------------------------ self test ----------------------------------

def _reference_gram(x):
    a, b, c, d = x.shape
    f = x.reshape(a * b, c * d).astype(jnp.float32)
    return (f @ f.T) / float(a * b * c * d)


if __name__ == "__main__":
    key = jax.random.PRNGKey(0)
    k1, k2, k3, k4, k5, k6 = jax.random.split(key, 6)

    # --- case 1: small NCHW conv features, f32, single-row-block path ---
    N, C, H, W = 2, 4, 16, 16
    target_feature = jax.random.normal(k1, (N, C, H, W), dtype=jnp.float32)
    x = jax.random.normal(k2, (N, C, H, W), dtype=jnp.float32)

    module = StyleLoss(target_feature)
    out = jax.block_until_ready(module(x))
    loss = jax.block_until_ready(module.loss)

    G_ref = _reference_gram(x)
    T_ref = _reference_gram(target_feature)
    loss_ref = jnp.mean((G_ref - T_ref) ** 2)

    assert out.shape == x.shape and jnp.allclose(out, x)
    assert jnp.allclose(module.target, T_ref, rtol=1e-5, atol=1e-6)
    assert jnp.allclose(loss, loss_ref, rtol=1e-5, atol=1e-6), (loss, loss_ref)

    # --- case 2: ragged K (14x14 -> 196), forced tk=128 exercises the
    #     last-step-only tail mask on the 1-D path ---
    xr = jax.random.normal(k3, (2, 4, 14, 14), dtype=jnp.float32)
    tr = jax.random.normal(k4, (2, 4, 14, 14), dtype=jnp.float32)
    G_r = jax.block_until_ready(gram_matrix(xr, tk=128))
    loss_r = jax.block_until_ready(style_loss(xr, _reference_gram(tr), tk=128))
    loss_r_ref = jnp.mean((_reference_gram(xr) - _reference_gram(tr)) ** 2)
    assert jnp.allclose(G_r, _reference_gram(xr), rtol=1e-4, atol=1e-5)
    assert jnp.allclose(loss_r, loss_r_ref, rtol=1e-4, atol=1e-6), (loss_r, loss_r_ref)

    # --- case 3: M=256 -> row-tiled ("parallel" leading axis, v7x dual-core) ---
    xb = jax.random.normal(k5, (2, 128, 8, 8), dtype=jnp.float32)
    tb = jax.random.normal(k6, (2, 128, 8, 8), dtype=jnp.float32)
    Gb_ref = _reference_gram(xb)
    Tb_ref = _reference_gram(tb)
    Gb = jax.block_until_ready(gram_matrix(xb))
    loss_b = jax.block_until_ready(style_loss(xb, Tb_ref))
    loss_b_ref = jnp.mean((Gb_ref - Tb_ref) ** 2)
    assert jnp.allclose(Gb, Gb_ref, rtol=1e-4, atol=1e-6)
    assert jnp.allclose(loss_b, loss_b_ref, rtol=1e-3, atol=1e-9), (loss_b, loss_b_ref)

    # --- case 4: row-tiled AND ragged K (masked tail on the 2-D path) ---
    xc = jax.random.normal(k5, (2, 128, 14, 14), dtype=jnp.float32)
    tc = jax.random.normal(k6, (2, 128, 14, 14), dtype=jnp.float32)
    Gc = jax.block_until_ready(gram_matrix(xc, tk=128))
    loss_c = jax.block_until_ready(style_loss(xc, _reference_gram(tc), tk=128))
    loss_c_ref = jnp.mean((_reference_gram(xc) - _reference_gram(tc)) ** 2)
    assert jnp.allclose(Gc, _reference_gram(xc), rtol=1e-4, atol=1e-6)
    assert jnp.allclose(loss_c, loss_c_ref, rtol=1e-3, atol=1e-9), (loss_c, loss_c_ref)

    # --- case 5: in-kernel bf16 tile cast (f32 accumulation), loose tolerance ---
    loss_bf16 = jax.block_until_ready(
        style_loss(x, T_ref, compute_dtype=jnp.bfloat16))
    assert jnp.allclose(loss_bf16, loss_ref, rtol=5e-2, atol=1e-3), (loss_bf16, loss_ref)

    print("KERNEL_OK")
</pallas_src>

<mosaic_0001>
module attributes {stable_mosaic.version = 11 : i64} {
  func.func @_gram_kernel_1d(%arg0: i32, %arg1: memref<8x256xf32, #tpu.memory_space<vmem>>, %arg2: memref<8x8xf32, #tpu.memory_space<vmem>>) attributes {dimension_semantics = [#tpu.dimension_semantics<arbitrary>], iteration_bounds = array<i64: 1>, scalar_prefetch = 0 : i64, scratch_operands = 0 : i64, tpu.core_type = #tpu.core_type<tc>, window_params = [{transform_indices = @transform_0, window_bounds = array<i64: 8, 256>}, {pipeline_mode = #tpu.pipeline_mode<synchronous>, transform_indices = @transform_1, window_bounds = array<i64: 8, 8>}]} {
    %c0_i32 = arith.constant 0 : i32
    %0 = arith.cmpi eq, %arg0, %c0_i32 : i32
    %1 = arith.extui %0 : i1 to i32
    %c0_i32_0 = arith.constant 0 : i32
    %2 = arith.cmpi ne, %1, %c0_i32_0 : i32
    scf.if %2 {
      %cst_8 = arith.constant 0.000000e+00 : f32
      %11 = vector.broadcast %cst_8 : f32 to vector<8x8xf32>
      %c0_9 = arith.constant 0 : index
      %c0_10 = arith.constant 0 : index
      %12 = vector.load %arg2[%c0_9, %c0_10] : memref<8x8xf32, #tpu.memory_space<vmem>>, vector<8x8xf32>
      tpu.vector_store %arg2[%c0_9, %c0_10], %11 {strides = array<i32>} : memref<8x8xf32, #tpu.memory_space<vmem>>, vector<8x8xf32>,
    } else {
    }
    %c0 = arith.constant 0 : index
    %c0_1 = arith.constant 0 : index
    %3 = vector.load %arg1[%c0, %c0_1] : memref<8x256xf32, #tpu.memory_space<vmem>>, vector<8x256xf32>
    %c0_2 = arith.constant 0 : index
    %c0_3 = arith.constant 0 : index
    %4 = vector.load %arg2[%c0_2, %c0_3] : memref<8x8xf32, #tpu.memory_space<vmem>>, vector<8x8xf32>
    %cst = arith.constant dense<0.000000e+00> : vector<8x8xf32>
    %5 = tpu.matmul %3, %3, %cst {dimension_numbers = #tpu.dot_dimension_numbers<[1], [1], [0], [0], [0, 0, 1, 0], [], []>} : vector<8x256xf32>, vector<8x256xf32>, vector<8x8xf32> -> vector<8x8xf32>
    %6 = arith.addf %4, %5 : vector<8x8xf32>
    %c0_4 = arith.constant 0 : index
    %c0_5 = arith.constant 0 : index
    %7 = vector.load %arg2[%c0_4, %c0_5] : memref<8x8xf32, #tpu.memory_space<vmem>>, vector<8x8xf32>
    tpu.vector_store %arg2[%c0_4, %c0_5], %6 {strides = array<i32>} : memref<8x8xf32, #tpu.memory_space<vmem>>, vector<8x8xf32>,
    %c0_i32_6 = arith.constant 0 : i32
    %8 = arith.cmpi eq, %arg0, %c0_i32_6 : i32
    %9 = arith.extui %8 : i1 to i32
    %c0_i32_7 = arith.constant 0 : i32
    %10 = arith.cmpi ne, %9, %c0_i32_7 : i32
    scf.if %10 {
      %c0_8 = arith.constant 0 : index
      %c0_9 = arith.constant 0 : index
      %11 = vector.load %arg2[%c0_8, %c0_9] : memref<8x8xf32, #tpu.memory_space<vmem>>, vector<8x8xf32>
      %cst_10 = arith.constant 4.8828125E-4 : f32
      %12 = vector.broadcast %cst_10 : f32 to vector<8x8xf32>
      %13 = arith.mulf %11, %12 : vector<8x8xf32>
      %c0_11 = arith.constant 0 : index
      %c0_12 = arith.constant 0 : index
      %14 = vector.load %arg2[%c0_11, %c0_12] : memref<8x8xf32, #tpu.memory_space<vmem>>, vector<8x8xf32>
      tpu.vector_store %arg2[%c0_11, %c0_12], %13 {strides = array<i32>} : memref<8x8xf32, #tpu.memory_space<vmem>>, vector<8x8xf32>,
    } else {
    }
    return
  }
  func.func @transform_0(%arg0: i32) -> (i32, i32) {
    %c0_i32 = arith.constant 0 : i32
    %c0_i32_0 = arith.constant 0 : i32
    return %c0_i32, %arg0 : i32, i32
  }
  func.func @transform_1(%arg0: i32) -> (i32, i32) {
    %c0_i32 = arith.constant 0 : i32
    %c0_i32_0 = arith.constant 0 : i32
    %c0_i32_1 = arith.constant 0 : i32
    return %c0_i32, %c0_i32_0 : i32, i32
  }
}

</mosaic_0001>

<llo_original>
// kernel: tpu_custom_call.1
$region0: #{tpu_custom_call.1}
  #allocation0 [shape = 'u32[]', space=smem, size = 0x4, offset = 0x4, fixed_abs, tag = 'smem constant byte address 0x4 - core index']
  #allocation1 [shape = 'u32[144,128]{1,0:T(1,128)}', space=vmem, size = 0x12000, scoped, tag = 'internal scratch']
  %s0 = inlined_call_operand.hbm [shape: f32[8,256], index: 0, kind: input, shape index: {}]
  %s1 = inlined_call_operand.hbm [shape: f32[8,8], index: 1, kind: output, shape index: {}]
  %s2 = sld [smem:[#allocation0]]
  $region26: #{tpu_custom_call.1} parent=0
    _
  %s4 = ssub.s32 1, %s2
  %s5 = scalar_select 0, %s4, %s2
  $region1: #{tpu_custom_call.1} parent=0
    #allocation2 [shape = 'u8[8192]{0}', space=vmem, size = 0x2000, scoped, tag = 'input window, operand 0, single buffered']
    #allocation3 [shape = 's32[1]{0}', space=sflag, size = 0x4, scoped, tag = 'scoped memory for tpu_custom_call.1']
    #allocation4 [shape = 's32[1]{0}', space=sflag, size = 0x4, scoped, tag = 'scoped memory for tpu_custom_call.1']
    #allocation5 [shape = 'u8[4096]{0}', space=vmem, size = 0x1000, scoped, tag = 'output window, operand 0, single buffered']
    %6 = vsyncpa [#allocation3], 0
    %7 = vsyncpa [#allocation4], 0
    // Predicated region
    $region2: #{tpu_custom_call.1} parent=1 // pred_check
      _
    $region3: #{tpu_custom_call.1} parent=1 // pred_check_branch
      %9 = sbr.rel (0) target = $region5
    $region4: #{tpu_custom_call.1} parent=1 // pred_region
      %s11 = ssub.s32 256, 256
      %12 = vsyncadd [#allocation3], %s11
      %s14 = sshll.u32 [#allocation2], 4
      %s15 = int_to_ptr.vmem [resolvable:$true] %s14
      %17 = dma.hbm_to_vmem [thread:$0]  %s0, 256, %s15, [#allocation3]
    $region5: #{tpu_custom_call.1} parent=1 // pred_fallthru
      _
    // Predicated region
    $region6: #{tpu_custom_call.1} parent=1 // pred_check
      _
    $region7: #{tpu_custom_call.1} parent=1 // pred_check_branch
      %19 = sbr.rel (0) target = $region9
    $region8: #{tpu_custom_call.1} parent=1 // pred_region
      %20 = dma.done [#allocation3], 256
    $region9: #{tpu_custom_call.1} parent=1 // pred_fallthru
      _
    %p21 = scmp.eq.s32.totalorder 0, 0
    // Predicated region
    $region10: #{tpu_custom_call.1} parent=1 // pred_check
      %p22 = pneg %p21
    $region11: #{tpu_custom_call.1} parent=1 // pred_check_branch
      %24 = sbr.rel (%p22) target = $region13
    $region12: #{tpu_custom_call.1} parent=1 // pred_region
      %vm25 = vcmask 64512
      %26 = vst.msk [vmem:[#allocation5] sm:$0xff] %vm25, 0.0
    $region13: #{tpu_custom_call.1} parent=1 // pred_fallthru
      _
    %v27 = vld [vmem:[#allocation2] sm:$0xff]
    %v28 = vld [vmem:[#allocation2 + $0x8] sm:$0xff]
    %v29 = vld [vmem:[#allocation5] sm:$0xff]
    %30 = vmatprep.subr.mxu0 0.0
    %31 = vmatpush1.xpose.msra.mxu0 0.0
    %32 = vmatprep.subr.mxu0 0.0
    %33 = vmatpush1.xpose.msra.mxu0 0.0
    %34 = vmatprep.subr.mxu0 0.0
    %35 = vmatpush1.xpose.msra.mxu0 0.0
    %36 = vmatprep.subr.mxu0 0.0
    %37 = vmatpush1.xpose.msra.mxu0 0.0
    %38 = vmatprep.subr.mxu0 0.0
    %39 = vmatpush1.xpose.msra.mxu0 0.0
    %40 = vmatprep.subr.mxu0 0.0
    %41 = vmatpush1.xpose.msra.mxu0 0.0
    %42 = vmatprep.subr.mxu0 0.0
    %43 = vmatpush1.xpose.msra.mxu0 0.0
    %44 = vmatprep.subr.mxu0 0.0
    %45 = vmatpush1.xpose.msra.mxu0 0.0
    %46 = vmatprep.subr.mxu0 0.0
    %47 = vmatpush1.xpose.msra.mxu0 0.0
    %48 = vmatprep.subr.mxu0 0.0
    %49 = vmatpush1.xpose.msra.mxu0 0.0
    %50 = vmatprep.subr.mxu0 0.0
    %51 = vmatpush1.xpose.msra.mxu0 0.0
    %52 = vmatprep.subr.mxu0 0.0
    %53 = vmatpush1.xpose.msra.mxu0 0.0
    %54 = vmatprep.subr.mxu0 0.0
    %55 = vmatpush1.xpose.msra.mxu0 0.0
    %56 = vmatprep.subr.mxu0 0.0
    %57 = vmatpush1.xpose.msra.mxu0 0.0
    %58 = vmatprep.subr.mxu0 0.0
    %59 = vmatpush1.xpose.msra.mxu0 0.0
    %60 = vmatprep.subr.mxu0 %v28
    %61 = vmatpush1.xpose.msra.mxu0 %v27
    %62 = vmatprep.subr.mxu0 0.0
    %63 = vmatpush2.xpose.msra.mxu0 0.0
    %64 = vmatprep.subr.mxu0 0.0
    %65 = vmatpush2.xpose.msra.mxu0 0.0
    %66 = vmatprep.subr.mxu0 0.0
    %67 = vmatpush2.xpose.msra.mxu0 0.0
    %68 = vmatprep.subr.mxu0 0.0
    %69 = vmatpush2.xpose.msra.mxu0 0.0
    %70 = vmatprep.subr.mxu0 0.0
    %71 = vmatpush2.xpose.msra.mxu0 0.0
    %72 = vmatprep.subr.mxu0 0.0
    %73 = vmatpush2.xpose.msra.mxu0 0.0
    %74 = vmatprep.subr.mxu0 0.0
    %75 = vmatpush2.xpose.msra.mxu0 0.0
    %76 = vmatprep.subr.mxu0 0.0
    %77 = vmatpush2.xpose.msra.mxu0 0.0
    %78 = vmatprep.subr.mxu0 0.0
    %79 = vmatpush2.xpose.msra.mxu0 0.0
    %80 = vmatprep.subr.mxu0 0.0
    %81 = vmatpush2.xpose.msra.mxu0 0.0
    %82 = vmatprep.subr.mxu0 0.0
    %83 = vmatpush2.xpose.msra.mxu0 0.0
    %84 = vmatprep.subr.mxu0 0.0
    %85 = vmatpush2.xpose.msra.mxu0 0.0
    %86 = vmatprep.subr.mxu0 0.0
    %87 = vmatpush2.xpose.msra.mxu0 0.0
    %88 = vmatprep.subr.mxu0 0.0
    %89 = vmatpush2.xpose.msra.mxu0 0.0
    %90 = vmatprep.subr.mxu0 0.0
    %91 = vmatpush2.xpose.msra.mxu0 0.0
    %92 = vmatprep.subr.mxu0 0.0
    %93 = vmatpush2.xpose.msra.mxu0 0.0
    %94 = vmatprep.mubr.f32.mxu0 %v28
    %95 = vmatmul.mubr.f32.gmra.mxu0 %v27
    %v96 = vpop.f32.mrf.mxu0
    %v97 = vadd.f32 0.0, %v96
    %v98 = vpop.f32.mrf.mxu0
    %99 = vdwg.mxu0
    %v100 = vadd.f32 %v29, %v97
    %vm101 = vcmask 64512
    %102 = vst.msk [vmem:[#allocation5] sm:$0xff] %vm101, %v100
    // Predicated region
    $region14: #{tpu_custom_call.1} parent=1 // pred_check
      %p103 = pneg %p21
    $region15: #{tpu_custom_call.1} parent=1 // pred_check_branch
      %105 = sbr.rel (%p103) target = $region17
    $region16: #{tpu_custom_call.1} parent=1 // pred_region
      %v106 = vld [vmem:[#allocation5] sm:$0xff]
      %v107 = vmul.f32 %v106, 0.00048828125
      %108 = vst.msk [vmem:[#allocation5] sm:$0xff] %vm101, %v107
    $region17: #{tpu_custom_call.1} parent=1 // pred_fallthru
      _
    // Predicated region
    $region18: #{tpu_custom_call.1} parent=1 // pred_check
      _
    $region19: #{tpu_custom_call.1} parent=1 // pred_check_branch
      %110 = sbr.rel (0) target = $region21
    $region20: #{tpu_custom_call.1} parent=1 // pred_region
      %s112 = ssub.s32 128, 128
      %113 = vsyncadd [#allocation4], %s112
      %s115 = sshll.u32 [#allocation5], 4
      %s116 = int_to_ptr.vmem [resolvable:$true] %s115
      %118 = dma.vmem_to_hbm [thread:$0]  %s116, 128, %s1, [#allocation4]
    $region21: #{tpu_custom_call.1} parent=1 // pred_fallthru
      _
    // Predicated region
    $region22: #{tpu_custom_call.1} parent=1 // pred_check
      _
    $region23: #{tpu_custom_call.1} parent=1 // pred_check_branch
      %120 = sbr.rel (0) target = $region25
    $region24: #{tpu_custom_call.1} parent=1 // pred_region
      %121 = dma.done [#allocation4], 128
    $region25: #{tpu_custom_call.1} parent=1 // pred_fallthru
      _
    %122 = vsyncpa [#allocation3], 1
    %123 = vsyncpa [#allocation4], 1

</llo_original>
